<compile_context>
chip_gen: v7x
topology: tpu7x:2x2x1
jax: 0.10.0
libtpu: 0.0.40
codegen_flags: <defaults>
</compile_context>

<pallas_src>
import functools

import jax
import jax.numpy as jnp
from jax import lax
from jax.experimental import pallas as pl
from jax.experimental.pallas import tpu as pltpu

# config.* values (synthetic, matching the small example shapes)
FEATURE_SIZE_H = 16
FEATURE_SIZE_W = 16
LAMBDA1 = 10.0
LAMBDA2 = 10.0

_TN_MAX = 128  # batch-tile rows per grid step (multiple of 8)


def _stair_loss_kernel(
    fb1_ref, cbt_ref, mb_ref,      # blue conf: pred, target, pos-mask   (tn, hw)
    fr1_ref, crt_ref, mr_ref,      # red  conf: pred, target, pos-mask   (tn, hw)
    fb2_ref, lbt_ref,              # blue loc : pred, target             (tn, 4*hw)
    fr2_ref, lrt_ref,              # red  loc : pred, target             (tn, 4*hw)
    f3_ref, mk_ref,                # mask head: logits, target           (tn, hw)
    out_ref,                       # (3,) SMEM output
    acc_ref,                       # (3, tn, hw) f32 VMEM accumulator
    *, tn, hw, n_total, lambda1, lambda2):
  i = pl.program_id(0)
  nsteps = pl.num_programs(0)

  @pl.when(i == 0)
  def _init():
    acc_ref[...] = jnp.zeros_like(acc_ref)

  # Cast after load (keeps HBM->VMEM traffic at native width for narrow dtypes).
  def f32(ref):
    return ref[...].astype(jnp.float32)

  # Row-validity guard, only compiled when the last block is ragged.
  if (n_total % tn) != 0:
    row = lax.broadcasted_iota(jnp.int32, (tn, 1), 0)
    valid = (i * tn + row) < n_total
    guard = lambda x: jnp.where(valid, x, 0.0)
  else:
    guard = lambda x: x

  mb = f32(mb_ref)
  mr = f32(mr_ref)

  # ---- confidence: 15*sum(m*v)+5*sum((1-m)*v) == sum((5+10m)*v), blue+red ----
  db = f32(fb1_ref) - f32(cbt_ref)
  dr = f32(fr1_ref) - f32(crt_ref)
  conf_w = (5.0 + 10.0 * mb) * (db * db) + (5.0 + 10.0 * mr) * (dr * dr)

  # ---- localization: m * (l1*(v0+v2) + l2*(v1+v3)), blue + red ---------------
  def loc_weighted(p_ref, t_ref, m):
    d = f32(p_ref) - f32(t_ref)            # (tn, 4*hw), channels lane-contiguous
    v = d * d
    sx = v[:, 0 * hw:1 * hw] + v[:, 2 * hw:3 * hw]   # 256-lane aligned slices
    sy = v[:, 1 * hw:2 * hw] + v[:, 3 * hw:4 * hw]
    return m * (lambda1 * sx + lambda2 * sy)

  loc_w = loc_weighted(fb2_ref, lbt_ref, mb) + loc_weighted(fr2_ref, lrt_ref, mr)

  # ---- mask loss: BCEWithLogitsLoss (stable form) ---------------------------
  x = f32(f3_ref)
  z = f32(mk_ref)
  bce = jnp.maximum(x, 0.0) - x * z + jnp.log1p(jnp.exp(-jnp.abs(x)))

  # Pure VPU accumulation per step; no cross-lane reductions until finalize.
  acc_ref[0] += guard(conf_w)
  acc_ref[1] += guard(loc_w)
  acc_ref[2] += guard(bce)

  @pl.when(i == nsteps - 1)
  def _finalize():
    inv = 1.0 / float(n_total * hw)
    out_ref[0] = jnp.sum(acc_ref[0]) * inv
    out_ref[1] = jnp.sum(acc_ref[1]) * inv
    out_ref[2] = jnp.sum(acc_ref[2]) * inv


def stair_loss_dynamic(outputs, blues, reds, masks,
                       lambda1=LAMBDA1, lambda2=LAMBDA2):
  """Pallas implementation of Stair_loss_Dynamic.forward.

  outputs = (fb1, fb2, fr1, fr2, f3) with NCHW shapes
    fb1, fr1, f3 : (N, 1, H, W)
    fb2, fr2     : (N, 4, H, W)
  blues = (conf_tgt (N,1,H,W), loc_tgt (N,4,H,W), pos_mask (N,1,H,W))
  reds  = same structure
  masks : (N, 1, H, W)
  returns (conf_loss, loc_loss, mask_loss) scalars.
  """
  fb1, fb2, fr1, fr2, f3 = outputs
  n = masks.shape[0]
  hw = FEATURE_SIZE_H * FEATURE_SIZE_W

  # Pure layout plumbing: contiguous reshapes only (bitcasts, no concat copies).
  r1 = lambda a: a.reshape(n, hw)         # (N,1,H,W) -> (N, HW)   lane-dense
  r4 = lambda a: a.reshape(n, 4 * hw)     # (N,4,H,W) -> (N, 4*HW) lane-dense

  inputs = (r1(fb1), r1(blues[0]), r1(blues[2]),
            r1(fr1), r1(reds[0]), r1(reds[2]),
            r4(fb2), r4(blues[1]),
            r4(fr2), r4(reds[1]),
            r1(f3), r1(masks))

  tn = n if n <= _TN_MAX else _TN_MAX
  nsteps = pl.cdiv(n, tn)

  spec1 = pl.BlockSpec((tn, hw), lambda i: (i, 0))
  spec4 = pl.BlockSpec((tn, 4 * hw), lambda i: (i, 0))
  in_specs = [spec1, spec1, spec1,
              spec1, spec1, spec1,
              spec4, spec4,
              spec4, spec4,
              spec1, spec1]

  total_bytes = sum(int(a.size) * a.dtype.itemsize for a in inputs) + 3 * 4
  cost = pl.CostEstimate(flops=int(40 * n * hw),
                         transcendentals=int(2 * n * hw),
                         bytes_accessed=int(total_bytes))

  kernel = functools.partial(_stair_loss_kernel, tn=tn, hw=hw, n_total=n,
                             lambda1=float(lambda1), lambda2=float(lambda2))

  out = pl.pallas_call(
      kernel,
      out_shape=jax.ShapeDtypeStruct((3,), jnp.float32),
      grid=(nsteps,),
      in_specs=in_specs,
      out_specs=pl.BlockSpec((3,), lambda i: (0,), memory_space=pltpu.SMEM),
      scratch_shapes=[pltpu.VMEM((3, tn, hw), jnp.float32)],
      compiler_params=pltpu.CompilerParams(
          dimension_semantics=("arbitrary",),
          vmem_limit_bytes=32 * 1024 * 1024),
      cost_estimate=cost,
  )(*inputs)
  return out[0], out[1], out[2]


# -------------------------- pure-JAX reference ------------------------------
def _reference(outputs, blues, reds, masks, lambda1=LAMBDA1, lambda2=LAMBDA2):
  fb1, fb2, fr1, fr2, f3 = outputs
  n = masks.shape[0]
  denom = n * FEATURE_SIZE_H * FEATURE_SIZE_W

  def conf(pred, tgt, m):
    v = (pred - tgt) ** 2
    p = jnp.sum(m * v) / denom
    ng = jnp.sum((1.0 - m) * v) / denom
    return 15.0 * p + 5.0 * ng

  def loc(pred, tgt, m):
    v = (pred - tgt) ** 2
    sx = jnp.sum(v[:, 0:4:2, :, :], axis=1, keepdims=True)
    sy = jnp.sum(v[:, 1:4:2, :, :], axis=1, keepdims=True)
    return (lambda1 * jnp.sum(m * sx) + lambda2 * jnp.sum(m * sy)) / denom

  conf_loss = conf(fb1, blues[0], blues[2]) + conf(fr1, reds[0], reds[2])
  loc_loss = loc(fb2, blues[1], blues[2]) + loc(fr2, reds[1], reds[2])
  bce = jnp.maximum(f3, 0.0) - f3 * masks + jnp.log1p(jnp.exp(-jnp.abs(f3)))
  return conf_loss, loc_loss, jnp.mean(bce)


if __name__ == "__main__":
  key = jax.random.PRNGKey(0)
  N, H, W = 2, FEATURE_SIZE_H, FEATURE_SIZE_W
  keys = jax.random.split(key, 12)

  fb1 = jax.random.normal(keys[0], (N, 1, H, W), jnp.float32)
  fb2 = jax.random.normal(keys[1], (N, 4, H, W), jnp.float32)
  fr1 = jax.random.normal(keys[2], (N, 1, H, W), jnp.float32)
  fr2 = jax.random.normal(keys[3], (N, 4, H, W), jnp.float32)
  f3 = jax.random.normal(keys[4], (N, 1, H, W), jnp.float32)

  blues = (jax.random.normal(keys[5], (N, 1, H, W), jnp.float32),
           jax.random.normal(keys[6], (N, 4, H, W), jnp.float32),
           (jax.random.uniform(keys[7], (N, 1, H, W)) > 0.5).astype(jnp.float32))
  reds = (jax.random.normal(keys[8], (N, 1, H, W), jnp.float32),
          jax.random.normal(keys[9], (N, 4, H, W), jnp.float32),
          (jax.random.uniform(keys[10], (N, 1, H, W)) > 0.5).astype(jnp.float32))
  masks = (jax.random.uniform(keys[11], (N, 1, H, W)) > 0.5).astype(jnp.float32)

  outputs = (fb1, fb2, fr1, fr2, f3)

  # jit so the wrapper reshapes stay pure bitcasts feeding the custom call.
  loss_fn = jax.jit(lambda o, b, r, m: stair_loss_dynamic(o, b, r, m))
  conf_l, loc_l, mask_l = jax.block_until_ready(loss_fn(outputs, blues, reds, masks))

  ref_conf, ref_loc, ref_mask = _reference(outputs, blues, reds, masks)
  assert jnp.allclose(conf_l, ref_conf, rtol=1e-5, atol=1e-5)
  assert jnp.allclose(loc_l, ref_loc, rtol=1e-5, atol=1e-5)
  assert jnp.allclose(mask_l, ref_mask, rtol=1e-5, atol=1e-5)

  print("KERNEL_OK")
</pallas_src>

<mosaic_0001>
module attributes {stable_mosaic.version = 11 : i64} {
  func.func @_stair_loss_kernel(%arg0: i32, %arg1: memref<2x256xf32, #tpu.memory_space<vmem>>, %arg2: memref<2x256xf32, #tpu.memory_space<vmem>>, %arg3: memref<2x256xf32, #tpu.memory_space<vmem>>, %arg4: memref<2x256xf32, #tpu.memory_space<vmem>>, %arg5: memref<2x256xf32, #tpu.memory_space<vmem>>, %arg6: memref<2x256xf32, #tpu.memory_space<vmem>>, %arg7: memref<2x1024xf32, #tpu.memory_space<vmem>>, %arg8: memref<2x1024xf32, #tpu.memory_space<vmem>>, %arg9: memref<2x1024xf32, #tpu.memory_space<vmem>>, %arg10: memref<2x1024xf32, #tpu.memory_space<vmem>>, %arg11: memref<2x256xf32, #tpu.memory_space<vmem>>, %arg12: memref<2x256xf32, #tpu.memory_space<vmem>>, %arg13: memref<3xf32, #tpu.memory_space<smem>>, %arg14: memref<3x2x256xf32, #tpu.memory_space<vmem>>) attributes {dimension_semantics = [#tpu.dimension_semantics<arbitrary>], iteration_bounds = array<i64: 1>, scalar_prefetch = 0 : i64, scratch_operands = 1 : i64, tpu.core_type = #tpu.core_type<tc>, window_params = [{transform_indices = @transform_0, window_bounds = array<i64: 2, 256>}, {transform_indices = @transform_1, window_bounds = array<i64: 2, 256>}, {transform_indices = @transform_2, window_bounds = array<i64: 2, 256>}, {transform_indices = @transform_3, window_bounds = array<i64: 2, 256>}, {transform_indices = @transform_4, window_bounds = array<i64: 2, 256>}, {transform_indices = @transform_5, window_bounds = array<i64: 2, 256>}, {transform_indices = @transform_6, window_bounds = array<i64: 2, 1024>}, {transform_indices = @transform_7, window_bounds = array<i64: 2, 1024>}, {transform_indices = @transform_8, window_bounds = array<i64: 2, 1024>}, {transform_indices = @transform_9, window_bounds = array<i64: 2, 1024>}, {transform_indices = @transform_10, window_bounds = array<i64: 2, 256>}, {transform_indices = @transform_11, window_bounds = array<i64: 2, 256>}, {transform_indices = @transform_12, window_bounds = array<i64: 3>}]} {
    %c0_i32 = arith.constant 0 : i32
    %0 = arith.cmpi eq, %arg0, %c0_i32 : i32
    %1 = arith.extui %0 : i1 to i32
    %c0_i32_0 = arith.constant 0 : i32
    %2 = arith.cmpi ne, %1, %c0_i32_0 : i32
    scf.if %2 {
      %cst_51 = arith.constant 0.000000e+00 : f32
      %90 = vector.broadcast %cst_51 : f32 to vector<3x2x256xf32>
      %c0_52 = arith.constant 0 : index
      %c0_53 = arith.constant 0 : index
      %c0_54 = arith.constant 0 : index
      %91 = vector.load %arg14[%c0_52, %c0_53, %c0_54] : memref<3x2x256xf32, #tpu.memory_space<vmem>>, vector<3x2x256xf32>
      tpu.vector_store %arg14[%c0_52, %c0_53, %c0_54], %90 {strides = array<i32>} : memref<3x2x256xf32, #tpu.memory_space<vmem>>, vector<3x2x256xf32>,
    } else {
    }
    %c0 = arith.constant 0 : index
    %c0_1 = arith.constant 0 : index
    %3 = vector.load %arg3[%c0, %c0_1] : memref<2x256xf32, #tpu.memory_space<vmem>>, vector<2x256xf32>
    %c0_2 = arith.constant 0 : index
    %c0_3 = arith.constant 0 : index
    %4 = vector.load %arg6[%c0_2, %c0_3] : memref<2x256xf32, #tpu.memory_space<vmem>>, vector<2x256xf32>
    %c0_4 = arith.constant 0 : index
    %c0_5 = arith.constant 0 : index
    %5 = vector.load %arg1[%c0_4, %c0_5] : memref<2x256xf32, #tpu.memory_space<vmem>>, vector<2x256xf32>
    %c0_6 = arith.constant 0 : index
    %c0_7 = arith.constant 0 : index
    %6 = vector.load %arg2[%c0_6, %c0_7] : memref<2x256xf32, #tpu.memory_space<vmem>>, vector<2x256xf32>
    %7 = arith.subf %5, %6 : vector<2x256xf32>
    %c0_8 = arith.constant 0 : index
    %c0_9 = arith.constant 0 : index
    %8 = vector.load %arg4[%c0_8, %c0_9] : memref<2x256xf32, #tpu.memory_space<vmem>>, vector<2x256xf32>
    %c0_10 = arith.constant 0 : index
    %c0_11 = arith.constant 0 : index
    %9 = vector.load %arg5[%c0_10, %c0_11] : memref<2x256xf32, #tpu.memory_space<vmem>>, vector<2x256xf32>
    %10 = arith.subf %8, %9 : vector<2x256xf32>
    %cst = arith.constant 1.000000e+01 : f32
    %11 = vector.broadcast %cst : f32 to vector<2x256xf32>
    %12 = arith.mulf %11, %3 : vector<2x256xf32>
    %cst_12 = arith.constant 5.000000e+00 : f32
    %13 = vector.broadcast %cst_12 : f32 to vector<2x256xf32>
    %14 = arith.addf %13, %12 : vector<2x256xf32>
    %15 = arith.mulf %7, %7 : vector<2x256xf32>
    %16 = arith.mulf %14, %15 : vector<2x256xf32>
    %cst_13 = arith.constant 1.000000e+01 : f32
    %17 = vector.broadcast %cst_13 : f32 to vector<2x256xf32>
    %18 = arith.mulf %17, %4 : vector<2x256xf32>
    %cst_14 = arith.constant 5.000000e+00 : f32
    %19 = vector.broadcast %cst_14 : f32 to vector<2x256xf32>
    %20 = arith.addf %19, %18 : vector<2x256xf32>
    %21 = arith.mulf %10, %10 : vector<2x256xf32>
    %22 = arith.mulf %20, %21 : vector<2x256xf32>
    %23 = arith.addf %16, %22 : vector<2x256xf32>
    %c0_15 = arith.constant 0 : index
    %c0_16 = arith.constant 0 : index
    %24 = vector.load %arg7[%c0_15, %c0_16] : memref<2x1024xf32, #tpu.memory_space<vmem>>, vector<2x1024xf32>
    %c0_17 = arith.constant 0 : index
    %c0_18 = arith.constant 0 : index
    %25 = vector.load %arg8[%c0_17, %c0_18] : memref<2x1024xf32, #tpu.memory_space<vmem>>, vector<2x1024xf32>
    %26 = arith.subf %24, %25 : vector<2x1024xf32>
    %27 = arith.mulf %26, %26 : vector<2x1024xf32>
    %28 = vector.extract_strided_slice %27 {offsets = [0, 0], sizes = [2, 256], strides = [1, 1]} : vector<2x1024xf32> to vector<2x256xf32>
    %29 = vector.extract_strided_slice %27 {offsets = [0, 512], sizes = [2, 256], strides = [1, 1]} : vector<2x1024xf32> to vector<2x256xf32>
    %30 = arith.addf %28, %29 : vector<2x256xf32>
    %31 = vector.extract_strided_slice %27 {offsets = [0, 256], sizes = [2, 256], strides = [1, 1]} : vector<2x1024xf32> to vector<2x256xf32>
    %32 = vector.extract_strided_slice %27 {offsets = [0, 768], sizes = [2, 256], strides = [1, 1]} : vector<2x1024xf32> to vector<2x256xf32>
    %33 = arith.addf %31, %32 : vector<2x256xf32>
    %cst_19 = arith.constant 1.000000e+01 : f32
    %34 = vector.broadcast %cst_19 : f32 to vector<2x256xf32>
    %35 = arith.mulf %34, %30 : vector<2x256xf32>
    %cst_20 = arith.constant 1.000000e+01 : f32
    %36 = vector.broadcast %cst_20 : f32 to vector<2x256xf32>
    %37 = arith.mulf %36, %33 : vector<2x256xf32>
    %38 = arith.addf %35, %37 : vector<2x256xf32>
    %39 = arith.mulf %3, %38 : vector<2x256xf32>
    %c0_21 = arith.constant 0 : index
    %c0_22 = arith.constant 0 : index
    %40 = vector.load %arg9[%c0_21, %c0_22] : memref<2x1024xf32, #tpu.memory_space<vmem>>, vector<2x1024xf32>
    %c0_23 = arith.constant 0 : index
    %c0_24 = arith.constant 0 : index
    %41 = vector.load %arg10[%c0_23, %c0_24] : memref<2x1024xf32, #tpu.memory_space<vmem>>, vector<2x1024xf32>
    %42 = arith.subf %40, %41 : vector<2x1024xf32>
    %43 = arith.mulf %42, %42 : vector<2x1024xf32>
    %44 = vector.extract_strided_slice %43 {offsets = [0, 0], sizes = [2, 256], strides = [1, 1]} : vector<2x1024xf32> to vector<2x256xf32>
    %45 = vector.extract_strided_slice %43 {offsets = [0, 512], sizes = [2, 256], strides = [1, 1]} : vector<2x1024xf32> to vector<2x256xf32>
    %46 = arith.addf %44, %45 : vector<2x256xf32>
    %47 = vector.extract_strided_slice %43 {offsets = [0, 256], sizes = [2, 256], strides = [1, 1]} : vector<2x1024xf32> to vector<2x256xf32>
    %48 = vector.extract_strided_slice %43 {offsets = [0, 768], sizes = [2, 256], strides = [1, 1]} : vector<2x1024xf32> to vector<2x256xf32>
    %49 = arith.addf %47, %48 : vector<2x256xf32>
    %cst_25 = arith.constant 1.000000e+01 : f32
    %50 = vector.broadcast %cst_25 : f32 to vector<2x256xf32>
    %51 = arith.mulf %50, %46 : vector<2x256xf32>
    %cst_26 = arith.constant 1.000000e+01 : f32
    %52 = vector.broadcast %cst_26 : f32 to vector<2x256xf32>
    %53 = arith.mulf %52, %49 : vector<2x256xf32>
    %54 = arith.addf %51, %53 : vector<2x256xf32>
    %55 = arith.mulf %4, %54 : vector<2x256xf32>
    %56 = arith.addf %39, %55 : vector<2x256xf32>
    %c0_27 = arith.constant 0 : index
    %c0_28 = arith.constant 0 : index
    %57 = vector.load %arg11[%c0_27, %c0_28] : memref<2x256xf32, #tpu.memory_space<vmem>>, vector<2x256xf32>
    %c0_29 = arith.constant 0 : index
    %c0_30 = arith.constant 0 : index
    %58 = vector.load %arg12[%c0_29, %c0_30] : memref<2x256xf32, #tpu.memory_space<vmem>>, vector<2x256xf32>
    %cst_31 = arith.constant 0.000000e+00 : f32
    %59 = vector.broadcast %cst_31 : f32 to vector<2x256xf32>
    %60 = arith.maximumf %57, %59 : vector<2x256xf32>
    %61 = arith.mulf %57, %58 : vector<2x256xf32>
    %62 = arith.subf %60, %61 : vector<2x256xf32>
    %63 = math.absf %57 : vector<2x256xf32>
    %cst_32 = arith.constant 0.000000e+00 : f32
    %64 = vector.broadcast %cst_32 : f32 to vector<2x256xf32>
    %65 = arith.subf %64, %63 : vector<2x256xf32>
    %66 = math.exp %65 : vector<2x256xf32>
    %67 = math.log1p %66 : vector<2x256xf32>
    %68 = arith.addf %62, %67 : vector<2x256xf32>
    %c0_33 = arith.constant 0 : index
    %c0_34 = arith.constant 0 : index
    %c0_35 = arith.constant 0 : index
    %69 = vector.load %arg14[%c0_33, %c0_34, %c0_35] : memref<3x2x256xf32, #tpu.memory_space<vmem>>, vector<1x2x256xf32>
    %70 = vector.shape_cast %69 : vector<1x2x256xf32> to vector<2x256xf32>
    %71 = arith.addf %70, %23 : vector<2x256xf32>
    %c0_36 = arith.constant 0 : index
    %c0_37 = arith.constant 0 : index
    %c0_38 = arith.constant 0 : index
    %72 = vector.load %arg14[%c0_36, %c0_37, %c0_38] : memref<3x2x256xf32, #tpu.memory_space<vmem>>, vector<1x2x256xf32>
    %73 = vector.shape_cast %72 : vector<1x2x256xf32> to vector<2x256xf32>
    %74 = vector.shape_cast %71 : vector<2x256xf32> to vector<1x2x256xf32>
    tpu.vector_store %arg14[%c0_36, %c0_37, %c0_38], %74 {strides = array<i32>} : memref<3x2x256xf32, #tpu.memory_space<vmem>>, vector<1x2x256xf32>,
    %c1 = arith.constant 1 : index
    %c0_39 = arith.constant 0 : index
    %c0_40 = arith.constant 0 : index
    %75 = vector.load %arg14[%c1, %c0_39, %c0_40] : memref<3x2x256xf32, #tpu.memory_space<vmem>>, vector<1x2x256xf32>
    %76 = vector.shape_cast %75 : vector<1x2x256xf32> to vector<2x256xf32>
    %77 = arith.addf %76, %56 : vector<2x256xf32>
    %c1_41 = arith.constant 1 : index
    %c0_42 = arith.constant 0 : index
    %c0_43 = arith.constant 0 : index
    %78 = vector.load %arg14[%c1_41, %c0_42, %c0_43] : memref<3x2x256xf32, #tpu.memory_space<vmem>>, vector<1x2x256xf32>
    %79 = vector.shape_cast %78 : vector<1x2x256xf32> to vector<2x256xf32>
    %80 = vector.shape_cast %77 : vector<2x256xf32> to vector<1x2x256xf32>
    tpu.vector_store %arg14[%c1_41, %c0_42, %c0_43], %80 {strides = array<i32>} : memref<3x2x256xf32, #tpu.memory_space<vmem>>, vector<1x2x256xf32>,
    %c2 = arith.constant 2 : index
    %c0_44 = arith.constant 0 : index
    %c0_45 = arith.constant 0 : index
    %81 = vector.load %arg14[%c2, %c0_44, %c0_45] : memref<3x2x256xf32, #tpu.memory_space<vmem>>, vector<1x2x256xf32>
    %82 = vector.shape_cast %81 : vector<1x2x256xf32> to vector<2x256xf32>
    %83 = arith.addf %82, %68 : vector<2x256xf32>
    %c2_46 = arith.constant 2 : index
    %c0_47 = arith.constant 0 : index
    %c0_48 = arith.constant 0 : index
    %84 = vector.load %arg14[%c2_46, %c0_47, %c0_48] : memref<3x2x256xf32, #tpu.memory_space<vmem>>, vector<1x2x256xf32>
    %85 = vector.shape_cast %84 : vector<1x2x256xf32> to vector<2x256xf32>
    %86 = vector.shape_cast %83 : vector<2x256xf32> to vector<1x2x256xf32>
    tpu.vector_store %arg14[%c2_46, %c0_47, %c0_48], %86 {strides = array<i32>} : memref<3x2x256xf32, #tpu.memory_space<vmem>>, vector<1x2x256xf32>,
    %c0_i32_49 = arith.constant 0 : i32
    %87 = arith.cmpi eq, %arg0, %c0_i32_49 : i32
    %88 = arith.extui %87 : i1 to i32
    %c0_i32_50 = arith.constant 0 : i32
    %89 = arith.cmpi ne, %88, %c0_i32_50 : i32
    scf.if %89 {
      %c0_51 = arith.constant 0 : index
      %c0_52 = arith.constant 0 : index
      %c0_53 = arith.constant 0 : index
      %90 = vector.load %arg14[%c0_51, %c0_52, %c0_53] : memref<3x2x256xf32, #tpu.memory_space<vmem>>, vector<1x2x256xf32>
      %91 = vector.shape_cast %90 : vector<1x2x256xf32> to vector<2x256xf32>
      %92 = vector.shape_cast %91 : vector<2x256xf32> to vector<1x2x256xf32>
      %cst_54 = arith.constant dense<0.000000e+00> : vector<1xf32>
      %93 = vector.multi_reduction <add>, %92, %cst_54 [1, 2] : vector<1x2x256xf32> to vector<1xf32>
      %94 = vector.shape_cast %93 : vector<1xf32> to vector<1x1x1xf32>
      %95 = vector.extract %94[0, 0, 0] : f32 from vector<1x1x1xf32>
      %cst_55 = arith.constant 0.001953125 : f32
      %96 = arith.mulf %95, %cst_55 : f32
      %c0_56 = arith.constant 0 : index
      %97 = memref.load %arg13[%c0_56] : memref<3xf32, #tpu.memory_space<smem>>
      memref.store %96, %arg13[%c0_56] : memref<3xf32, #tpu.memory_space<smem>>
      %c1_57 = arith.constant 1 : index
      %c0_58 = arith.constant 0 : index
      %c0_59 = arith.constant 0 : index
      %98 = vector.load %arg14[%c1_57, %c0_58, %c0_59] : memref<3x2x256xf32, #tpu.memory_space<vmem>>, vector<1x2x256xf32>
      %99 = vector.shape_cast %98 : vector<1x2x256xf32> to vector<2x256xf32>
      %100 = vector.shape_cast %99 : vector<2x256xf32> to vector<1x2x256xf32>
      %cst_60 = arith.constant dense<0.000000e+00> : vector<1xf32>
      %101 = vector.multi_reduction <add>, %100, %cst_60 [1, 2] : vector<1x2x256xf32> to vector<1xf32>
      %102 = vector.shape_cast %101 : vector<1xf32> to vector<1x1x1xf32>
      %103 = vector.extract %102[0, 0, 0] : f32 from vector<1x1x1xf32>
      %cst_61 = arith.constant 0.001953125 : f32
      %104 = arith.mulf %103, %cst_61 : f32
      %c1_62 = arith.constant 1 : index
      %105 = memref.load %arg13[%c1_62] : memref<3xf32, #tpu.memory_space<smem>>
      memref.store %104, %arg13[%c1_62] : memref<3xf32, #tpu.memory_space<smem>>
      %c2_63 = arith.constant 2 : index
      %c0_64 = arith.constant 0 : index
      %c0_65 = arith.constant 0 : index
      %106 = vector.load %arg14[%c2_63, %c0_64, %c0_65] : memref<3x2x256xf32, #tpu.memory_space<vmem>>, vector<1x2x256xf32>
      %107 = vector.shape_cast %106 : vector<1x2x256xf32> to vector<2x256xf32>
      %108 = vector.shape_cast %107 : vector<2x256xf32> to vector<1x2x256xf32>
      %cst_66 = arith.constant dense<0.000000e+00> : vector<1xf32>
      %109 = vector.multi_reduction <add>, %108, %cst_66 [1, 2] : vector<1x2x256xf32> to vector<1xf32>
      %110 = vector.shape_cast %109 : vector<1xf32> to vector<1x1x1xf32>
      %111 = vector.extract %110[0, 0, 0] : f32 from vector<1x1x1xf32>
      %cst_67 = arith.constant 0.001953125 : f32
      %112 = arith.mulf %111, %cst_67 : f32
      %c2_68 = arith.constant 2 : index
      %113 = memref.load %arg13[%c2_68] : memref<3xf32, #tpu.memory_space<smem>>
      memref.store %112, %arg13[%c2_68] : memref<3xf32, #tpu.memory_space<smem>>
    } else {
    }
    return
  }
  func.func @transform_0(%arg0: i32) -> (i32, i32) {
    %c0_i32 = arith.constant 0 : i32
    %c0_i32_0 = arith.constant 0 : i32
    return %arg0, %c0_i32 : i32, i32
  }
  func.func @transform_1(%arg0: i32) -> (i32, i32) {
    %c0_i32 = arith.constant 0 : i32
    %c0_i32_0 = arith.constant 0 : i32
    return %arg0, %c0_i32 : i32, i32
  }
  func.func @transform_2(%arg0: i32) -> (i32, i32) {
    %c0_i32 = arith.constant 0 : i32
    %c0_i32_0 = arith.constant 0 : i32
    return %arg0, %c0_i32 : i32, i32
  }
  func.func @transform_3(%arg0: i32) -> (i32, i32) {
    %c0_i32 = arith.constant 0 : i32
    %c0_i32_0 = arith.constant 0 : i32
    return %arg0, %c0_i32 : i32, i32
  }
  func.func @transform_4(%arg0: i32) -> (i32, i32) {
    %c0_i32 = arith.constant 0 : i32
    %c0_i32_0 = arith.constant 0 : i32
    return %arg0, %c0_i32 : i32, i32
  }
  func.func @transform_5(%arg0: i32) -> (i32, i32) {
    %c0_i32 = arith.constant 0 : i32
    %c0_i32_0 = arith.constant 0 : i32
    return %arg0, %c0_i32 : i32, i32
  }
  func.func @transform_6(%arg0: i32) -> (i32, i32) {
    %c0_i32 = arith.constant 0 : i32
    %c0_i32_0 = arith.constant 0 : i32
    return %arg0, %c0_i32 : i32, i32
  }
  func.func @transform_7(%arg0: i32) -> (i32, i32) {
    %c0_i32 = arith.constant 0 : i32
    %c0_i32_0 = arith.constant 0 : i32
    return %arg0, %c0_i32 : i32, i32
  }
  func.func @transform_8(%arg0: i32) -> (i32, i32) {
    %c0_i32 = arith.constant 0 : i32
    %c0_i32_0 = arith.constant 0 : i32
    return %arg0, %c0_i32 : i32, i32
  }
  func.func @transform_9(%arg0: i32) -> (i32, i32) {
    %c0_i32 = arith.constant 0 : i32
    %c0_i32_0 = arith.constant 0 : i32
    return %arg0, %c0_i32 : i32, i32
  }
  func.func @transform_10(%arg0: i32) -> (i32, i32) {
    %c0_i32 = arith.constant 0 : i32
    %c0_i32_0 = arith.constant 0 : i32
    return %arg0, %c0_i32 : i32, i32
  }
  func.func @transform_11(%arg0: i32) -> (i32, i32) {
    %c0_i32 = arith.constant 0 : i32
    %c0_i32_0 = arith.constant 0 : i32
    return %arg0, %c0_i32 : i32, i32
  }
  func.func @transform_12(%arg0: i32) -> i32 {
    %c0_i32 = arith.constant 0 : i32
    %c0_i32_0 = arith.constant 0 : i32
    return %c0_i32 : i32
  }
}

</mosaic_0001>

<llo_original>
// kernel: _lambda_.1
$region0: #{_lambda_.1}
  #allocation0 [shape = 'u32[]', space=smem, size = 0x4, offset = 0x4, fixed_abs, tag = 'smem constant byte address 0x4 - core index']
  #allocation1 [shape = 'u32[144,128]{1,0:T(1,128)}', space=vmem, size = 0x12000, scoped, tag = 'internal scratch']
  #allocation2 [shape = 'f32[3,2,256]{2,1,0:T(2,128)}', space=vmem, size = 0x1800, scoped, tag = 'scratch operand']
  %s0 = inlined_call_operand.vmem [shape: f32[2,256], index: 0, kind: input, shape index: {}]
  %s1 = inlined_call_operand.vmem [shape: f32[2,256], index: 1, kind: input, shape index: {}]
  %s2 = inlined_call_operand.vmem [shape: f32[2,256], index: 2, kind: input, shape index: {}]
  %s3 = inlined_call_operand.vmem [shape: f32[2,256], index: 3, kind: input, shape index: {}]
  %s4 = inlined_call_operand.vmem [shape: f32[2,256], index: 4, kind: input, shape index: {}]
  %s5 = inlined_call_operand.vmem [shape: f32[2,256], index: 5, kind: input, shape index: {}]
  %s6 = inlined_call_operand.vmem [shape: f32[2,1024], index: 6, kind: input, shape index: {}]
  %s7 = inlined_call_operand.vmem [shape: f32[2,1024], index: 7, kind: input, shape index: {}]
  %s8 = inlined_call_operand.vmem [shape: f32[2,1024], index: 8, kind: input, shape index: {}]
  %s9 = inlined_call_operand.vmem [shape: f32[2,1024], index: 9, kind: input, shape index: {}]
  %s10 = inlined_call_operand.vmem [shape: f32[2,256], index: 10, kind: input, shape index: {}]
  %s11 = inlined_call_operand.vmem [shape: f32[2,256], index: 11, kind: input, shape index: {}]
  %s12 = inlined_call_operand.vmem [shape: f32[3], index: 12, kind: output, shape index: {}]
  %s13 = sld [smem:[#allocation0]]
  $region66: #{_lambda_.1} parent=0
    _
  %s15 = ssub.s32 1, %s13
  %s16 = scalar_select 0, %s15, %s13
  $region1: #{_lambda_.1} parent=0
    #allocation3 [shape = 'u8[512]{0}', space=smem, size = 0x200, scoped, tag = 'output window, operand 0, single buffered']
    #allocation4 [shape = 's32[1]{0}', space=sflag, size = 0x4, scoped, tag = 'scoped memory for _lambda_.1']
    %17 = vsyncpa [#allocation4], 0
    // Predicated region
    $region2: #{_lambda_.1} parent=1 // pred_check
      _
    $region3: #{_lambda_.1} parent=1 // pred_check_branch
      %19 = sbr.rel (0) target = $region5
    $region4: #{_lambda_.1} parent=1 // pred_region
      _
    $region5: #{_lambda_.1} parent=1 // pred_fallthru
      _
    // Predicated region
    $region6: #{_lambda_.1} parent=1 // pred_check
      _
    $region7: #{_lambda_.1} parent=1 // pred_check_branch
      %21 = sbr.rel (0) target = $region9
    $region8: #{_lambda_.1} parent=1 // pred_region
      _
    $region9: #{_lambda_.1} parent=1 // pred_fallthru
      _
    // Predicated region
    $region10: #{_lambda_.1} parent=1 // pred_check
      _
    $region11: #{_lambda_.1} parent=1 // pred_check_branch
      %23 = sbr.rel (0) target = $region13
    $region12: #{_lambda_.1} parent=1 // pred_region
      _
    $region13: #{_lambda_.1} parent=1 // pred_fallthru
      _
    // Predicated region
    $region14: #{_lambda_.1} parent=1 // pred_check
      _
    $region15: #{_lambda_.1} parent=1 // pred_check_branch
      %25 = sbr.rel (0) target = $region17
    $region16: #{_lambda_.1} parent=1 // pred_region
      _
    $region17: #{_lambda_.1} parent=1 // pred_fallthru
      _
    // Predicated region
    $region18: #{_lambda_.1} parent=1 // pred_check
      _
    $region19: #{_lambda_.1} parent=1 // pred_check_branch
      %27 = sbr.rel (0) target = $region21
    $region20: #{_lambda_.1} parent=1 // pred_region
      _
    $region21: #{_lambda_.1} parent=1 // pred_fallthru
      _
    // Predicated region
    $region22: #{_lambda_.1} parent=1 // pred_check
      _
    $region23: #{_lambda_.1} parent=1 // pred_check_branch
      %29 = sbr.rel (0) target = $region25
    $region24: #{_lambda_.1} parent=1 // pred_region
      _
    $region25: #{_lambda_.1} parent=1 // pred_fallthru
      _
    // Predicated region
    $region26: #{_lambda_.1} parent=1 // pred_check
      _
    $region27: #{_lambda_.1} parent=1 // pred_check_branch
      %31 = sbr.rel (0) target = $region29
    $region28: #{_lambda_.1} parent=1 // pred_region
      _
    $region29: #{_lambda_.1} parent=1 // pred_fallthru
      _
    // Predicated region
    $region30: #{_lambda_.1} parent=1 // pred_check
      _
    $region31: #{_lambda_.1} parent=1 // pred_check_branch
      %33 = sbr.rel (0) target = $region33
    $region32: #{_lambda_.1} parent=1 // pred_region
      _
    $region33: #{_lambda_.1} parent=1 // pred_fallthru
      _
    // Predicated region
    $region34: #{_lambda_.1} parent=1 // pred_check
      _
    $region35: #{_lambda_.1} parent=1 // pred_check_branch
      %35 = sbr.rel (0) target = $region37
    $region36: #{_lambda_.1} parent=1 // pred_region
      _
    $region37: #{_lambda_.1} parent=1 // pred_fallthru
      _
    // Predicated region
    $region38: #{_lambda_.1} parent=1 // pred_check
      _
    $region39: #{_lambda_.1} parent=1 // pred_check_branch
      %37 = sbr.rel (0) target = $region41
    $region40: #{_lambda_.1} parent=1 // pred_region
      _
    $region41: #{_lambda_.1} parent=1 // pred_fallthru
      _
    // Predicated region
    $region42: #{_lambda_.1} parent=1 // pred_check
      _
    $region43: #{_lambda_.1} parent=1 // pred_check_branch
      %39 = sbr.rel (0) target = $region45
    $region44: #{_lambda_.1} parent=1 // pred_region
      _
    $region45: #{_lambda_.1} parent=1 // pred_fallthru
      _
    // Predicated region
    $region46: #{_lambda_.1} parent=1 // pred_check
      _
    $region47: #{_lambda_.1} parent=1 // pred_check_branch
      %41 = sbr.rel (0) target = $region49
    $region48: #{_lambda_.1} parent=1 // pred_region
      _
    $region49: #{_lambda_.1} parent=1 // pred_fallthru
      _
    %p42 = scmp.eq.s32.totalorder 0, 0
    // Predicated region
    $region50: #{_lambda_.1} parent=1 // pred_check
      %p43 = pneg %p42
    $region51: #{_lambda_.1} parent=1 // pred_check_branch
      %45 = sbr.rel (%p43) target = $region53
    $region52: #{_lambda_.1} parent=1 // pred_region
      %46 = vst [vmem:[#allocation2] sm:$0xf] 0.0
      %47 = vst [vmem:[#allocation2 + $0x4] sm:$0xf] 0.0
      %48 = vst [vmem:[#allocation2 + $0x8] sm:$0xf] 0.0
    $region53: #{_lambda_.1} parent=1 // pred_fallthru
      _
    %v49 = vld [vmem:[%s2] sm:$0xf]
    %v50 = vld [vmem:[%s5] sm:$0xf]
    %v51 = vld [vmem:[%s0] sm:$0xf]
    %v52 = vld [vmem:[%s1] sm:$0xf]
    %v53 = vsub.f32 %v51, %v52
    %v54 = vld [vmem:[%s3] sm:$0xf]
    %v55 = vld [vmem:[%s4] sm:$0xf]
    %v56 = vsub.f32 %v54, %v55
    %v57 = vmul.f32 %v49, 10.0
    %v58 = vadd.f32 %v57, 5.0
    %v59 = vmul.f32 %v53, %v53
    %v60 = vmul.f32 %v58, %v59
    %v61 = vmul.f32 %v50, 10.0
    %v62 = vadd.f32 %v61, 5.0
    %v63 = vmul.f32 %v56, %v56
    %v64 = vmul.f32 %v62, %v63
    %v65 = vadd.f32 %v60, %v64
    %v66 = vld [vmem:[%s6] sm:$0xff]
    %v67 = vld [vmem:[%s6 + $0x8] sm:$0xff]
    %v68 = vld [vmem:[%s7] sm:$0xff]
    %v69 = vld [vmem:[%s7 + $0x8] sm:$0xff]
    %v70 = vsub.f32 %v66, %v68
    %v71 = vsub.f32 %v67, %v69
    %v72 = vmul.f32 %v70, %v70
    %v73 = vmul.f32 %v71, %v71
    %v74 = vadd.f32 %v72, %v73
    %v76 = vrot.slane %v72, 4
    %v79 = vrot.slane %v73, 4
    %v81 = vadd.f32 %v76, %v79
    %v82 = vmul.f32 %v74, 10.0
    %v83 = vmul.f32 %v81, 10.0
    %v84 = vadd.f32 %v82, %v83
    %v85 = vmul.f32 %v49, %v84
    %v86 = vld [vmem:[%s8] sm:$0xff]
    %v87 = vld [vmem:[%s8 + $0x8] sm:$0xff]
    %v88 = vld [vmem:[%s9] sm:$0xff]
    %v89 = vld [vmem:[%s9 + $0x8] sm:$0xff]
    %v90 = vsub.f32 %v86, %v88
    %v91 = vsub.f32 %v87, %v89
    %v92 = vmul.f32 %v90, %v90
    %v93 = vmul.f32 %v91, %v91
    %v94 = vadd.f32 %v92, %v93
    %v96 = vrot.slane %v92, 4
    %v99 = vrot.slane %v93, 4
    %v101 = vadd.f32 %v96, %v99
    %v102 = vmul.f32 %v94, 10.0
    %v103 = vmul.f32 %v101, 10.0
    %v104 = vadd.f32 %v102, %v103
    %v105 = vmul.f32 %v50, %v104
    %v106 = vadd.f32 %v85, %v105
    %v107 = vld [vmem:[%s10] sm:$0xf]
    %v108 = vld [vmem:[%s11] sm:$0xf]
    %v109 = vmax.f32 %v107, 0.0
    %v110 = vmul.f32 %v107, %v108
    %v111 = vsub.f32 %v109, %v110
    %v112 = vand.u32 2147483647, %v107
    %v113 = vsub.f32 0.0, %v112
    %v114 = vmul.f32 %v113, 1.442695
    %v115 = vpow.pop %v114
    %v116 = vadd.f32 %v115, 1.0
    %v117 = vlog2.pop %v116
    %v118 = vmul.f32 %v117, 0.6931472
    %v119 = vmul.f32 -0.5, %v115
    %v120 = vadd.f32 %v119, 1.0
    %v121 = vmul.f32 %v120, %v115
    %v122 = vand.u32 2147483647, %v115
    %vm123 = vcmp.lt.f32.partialorder %v122, 0.0004427343
    %v124 = vsel %vm123, %v121, %v118
    %v125 = vadd.f32 %v111, %v124
    %v126 = vld [vmem:[#allocation2] sm:$0xf]
    %v127 = vadd.f32 %v126, %v65
    %128 = vst [vmem:[#allocation2] sm:$0xf] %v127
    %s129 = scalar_lea.vmem [#allocation2], 4
    %v130 = vld [vmem:[%s129] sm:$0xf]
    %v131 = vadd.f32 %v130, %v106
    %132 = vst [vmem:[%s129] sm:$0xf] %v131
    %s133 = scalar_lea.vmem [#allocation2], 8
    %v134 = vld [vmem:[%s133] sm:$0xf]
    %v135 = vadd.f32 %v134, %v125
    %136 = vst [vmem:[%s133] sm:$0xf] %v135
    // Predicated region
    $region54: #{_lambda_.1} parent=1 // pred_check
      %p137 = pneg %p42
    $region55: #{_lambda_.1} parent=1 // pred_check_branch
      %139 = sbr.rel (%p137) target = $region57
    $region56: #{_lambda_.1} parent=1 // pred_region
      %v140 = vld [vmem:[#allocation2] sm:$0xf]
      %v143 = vunpack.c.l.s4 1983009808
      %v144 = vunpack.c.0.s8 %v143
      %v145 = vlaneseq
      %v146 = vshrl.u32 %v145, 7
      %v147 = vsub.s32 %v144, %v146
      %v148 = vrot.slane %v140, %v147
      %v149 = vcombine.high %v148, %v148
      %vm152 = vcmask 1041408
      %v153 = vsel %vm152, %v148, 0.0
      %v154 = vsel %vm152, %v149, 0.0
      %v155 = vadd.f32 %v153, %v154
      %156 = vadd.xlane.f32.xlu0 %v155
      %v157 = vpop.xlane.xlu0 %156
      %v158 = vrot.slane %v157, 4
      %v159 = vadd.f32 %v157, %v158
      %v160 = vrot.slane %v159, 2
      %v161 = vadd.f32 %v159, %v160
      %v162 = vrot.slane %v161, 1
      %v163 = vadd.f32 %v161, %v162
      %s164 = vtos %v163
      %s165 = smul.f32 %s164, 0.001953125
      %s166 = scalar_lea.smem [#allocation3], 0
      %167 = sst [smem:[%s166]] %s165
      %v168 = vld [vmem:[%s129] sm:$0xf]
      %v171 = vunpack.c.l.s4 1983009808
      %v172 = vunpack.c.0.s8 %v171
      %v173 = vlaneseq
      %v174 = vshrl.u32 %v173, 7
      %v175 = vsub.s32 %v172, %v174
      %v176 = vrot.slane %v168, %v175
      %v177 = vcombine.high %v176, %v176
      %v180 = vsel %vm152, %v176, 0.0
      %v181 = vsel %vm152, %v177, 0.0
      %v182 = vadd.f32 %v180, %v181
      %183 = vadd.xlane.f32.xlu0 %v182
      %v184 = vpop.xlane.xlu0 %183
      %v185 = vrot.slane %v184, 4
      %v186 = vadd.f32 %v184, %v185
      %v187 = vrot.slane %v186, 2
      %v188 = vadd.f32 %v186, %v187
      %v189 = vrot.slane %v188, 1
      %v190 = vadd.f32 %v188, %v189
      %s191 = vtos %v190
      %s192 = smul.f32 %s191, 0.001953125
      %s193 = scalar_lea.smem [#allocation3], 1
      %194 = sst [smem:[%s193]] %s192
      %v195 = vld [vmem:[%s133] sm:$0xf]
      %v198 = vunpack.c.l.s4 1983009808
      %v199 = vunpack.c.0.s8 %v198
      %v200 = vlaneseq
      %v201 = vshrl.u32 %v200, 7
      %v202 = vsub.s32 %v199, %v201
      %v203 = vrot.slane %v195, %v202
      %v204 = vcombine.high %v203, %v203
      %v207 = vsel %vm152, %v203, 0.0
      %v208 = vsel %vm152, %v204, 0.0
      %v209 = vadd.f32 %v207, %v208
      %210 = vadd.xlane.f32.xlu0 %v209
      %v211 = vpop.xlane.xlu0 %210
      %v212 = vrot.slane %v211, 4
      %v213 = vadd.f32 %v211, %v212
      %v214 = vrot.slane %v213, 2
      %v215 = vadd.f32 %v213, %v214
      %v216 = vrot.slane %v215, 1
      %v217 = vadd.f32 %v215, %v216
      %s218 = vtos %v217
      %s219 = smul.f32 %s218, 0.001953125
      %s220 = scalar_lea.smem [#allocation3], 2
      %221 = sst [smem:[%s220]] %s219
    $region57: #{_lambda_.1} parent=1 // pred_fallthru
      _
    // Predicated region
    $region58: #{_lambda_.1} parent=1 // pred_check
      _
    $region59: #{_lambda_.1} parent=1 // pred_check_branch
      %223 = sbr.rel (0) target = $region61
    $region60: #{_lambda_.1} parent=1 // pred_region
      %s225 = ssub.s32 16, 16
      %226 = vsyncadd [#allocation4], %s225
      %s228 = sshll.u32 %s12, 4
      %s229 = int_to_ptr.vmem [resolvable:$true] %s228
      %231 = dma.smem_to_vmem [#allocation3], 16, %s229, [#allocation4]
    $region61: #{_lambda_.1} parent=1 // pred_fallthru
      _
    // Predicated region
    $region62: #{_lambda_.1} parent=1 // pred_check
      _
    $region63: #{_lambda_.1} parent=1 // pred_check_branch
      %233 = sbr.rel (0) target = $region65
    $region64: #{_lambda_.1} parent=1 // pred_region
      %234 = dma.done [#allocation4], 16
    $region65: #{_lambda_.1} parent=1 // pred_fallthru
      _
    %235 = sfence
    %236 = vsyncpa [#allocation4], 1

</llo_original>
